<compile_context>
chip_gen: v5e
topology: v5e:2x2
jax: 0.10.0
libtpu: 0.0.40
codegen_flags: <defaults>
</compile_context>

<pallas_src>
import jax
import jax.numpy as jnp
from jax.experimental import pallas as pl
from jax.experimental.pallas import tpu as pltpu

# Small, PyTorch-consistent shapes.
B, C_IN, C_MID, C_OUT, H, W = 2, 4, 8, 8, 16, 16
HW = H * W
C_PAD = 8  # input channels zero-padded to a sublane multiple (aligned im2col concat)


def _im2col_rows(a, m_left, m_right):
    """a: (C8, HW) channel-major map (C8 a multiple of 8, here 8).

    Returns (9*C8, HW): row block k = 3*ky + kx holds `a` shifted by
    (ky-1, kx-1) with Conv2d(padding=1) zero semantics, so a 3x3 conv becomes a
    single matmul against a (C_out, 9*C8) weight.
    """
    c8, n = a.shape
    # Lane-axis zero pad: covers every vertically out-of-range tap (y+dy outside [0,H)).
    ap = jnp.pad(a, ((0, 0), (W + 1, W + 1)))
    blocks = []
    for ky in range(3):
        for kx in range(3):
            s = (ky - 1) * W + (kx - 1)
            t = ap[:, W + 1 + s: W + 1 + s + n]      # t[:, p] = a[:, p+s] (0 if p+s OOB)
            if kx == 0:                               # needs left neighbour: x-1 >= 0
                t = jnp.where(m_left, t, 0.0)
            elif kx == 2:                             # needs right neighbour: x+1 < W
                t = jnp.where(m_right, t, 0.0)
            blocks.append(t)
    return jnp.concatenate(blocks, axis=0)            # each block is 8 sublanes -> aligned


def residual_block_kernel(x_ref, w1_ref, b1_ref, w2_ref, b2_ref, ws_ref, o_ref):
    # x_ref : (1, C_IN, HW)      one image, channel-major, lane-dense reads
    # w1_ref: (C_MID, 9*C_PAD)   conv1 weight in im2col layout (ci zero-padded to C_PAD)
    # b1_ref: (C_MID, 1)
    # w2_ref: (C_OUT, 9*C_MID)   conv2 weight in im2col layout
    # b2_ref: (C_OUT, 1)
    # ws_ref: (C_OUT, C_PAD)     1x1 skip conv weight (ci zero-padded), no bias
    # o_ref : (1, C_OUT, HW)     NCHW output, lane-dense (256-lane) store
    x = x_ref[0]                                               # (C_IN, HW)
    x8 = jnp.pad(x, ((0, C_PAD - C_IN), (0, 0)))               # align channels to 8 sublanes

    col = jax.lax.broadcasted_iota(jnp.int32, (C_PAD, HW), 1) % W
    m_left = col >= 1                                          # pixel has a left neighbour
    m_right = col <= W - 2                                     # pixel has a right neighbour

    # ---- main path: conv3x3 -> ReLU -> conv3x3 (one MXU matmul per conv) ----
    xt = _im2col_rows(x8, m_left, m_right)                     # (9*C_PAD, HW)
    h = jnp.dot(w1_ref[...], xt, preferred_element_type=jnp.float32) + b1_ref[...]
    h = jnp.maximum(h, 0.0)                                    # (C_MID, HW)

    ht = _im2col_rows(h, m_left, m_right)                      # (9*C_MID, HW)
    main = jnp.dot(w2_ref[...], ht, preferred_element_type=jnp.float32) + b2_ref[...]

    # ---- skip path: 1x1 conv (no bias) ----
    skip = jnp.dot(ws_ref[...], x8, preferred_element_type=jnp.float32)

    # ---- residual add, lane-dense store ----
    o_ref[0] = (main + skip).astype(o_ref.dtype)


def residual_block(x_nchw, w1, b1, w2, b2, ws):
    """x_nchw: (B, C_IN, H, W) f32, conv weights HWIO -> (B, C_OUT, H, W) f32."""
    # One-time, tiny parameter re-layout (constant-folded under jit in real use).
    w1p = jnp.pad(w1, ((0, 0), (0, 0), (0, C_PAD - C_IN), (0, 0)))   # pad ci -> C_PAD
    w1k = w1p.reshape(9 * C_PAD, C_MID).T                            # (C_MID, 9*C_PAD)
    w2k = w2.reshape(9 * C_MID, C_OUT).T                             # (C_OUT, 9*C_MID)
    wsk = jnp.pad(ws, ((0, C_PAD - C_IN), (0, 0))).T                 # (C_OUT, C_PAD)
    b1k = b1.reshape(C_MID, 1)
    b2k = b2.reshape(C_OUT, 1)
    x = x_nchw.reshape(B, C_IN, HW)                                  # free reshape, stays NCHW

    out = pl.pallas_call(
        residual_block_kernel,
        out_shape=jax.ShapeDtypeStruct((B, C_OUT, HW), jnp.float32),
        grid=(B,),
        in_specs=[
            pl.BlockSpec((1, C_IN, HW), lambda b: (b, 0, 0)),
            pl.BlockSpec((C_MID, 9 * C_PAD), lambda b: (0, 0)),
            pl.BlockSpec((C_MID, 1), lambda b: (0, 0)),
            pl.BlockSpec((C_OUT, 9 * C_MID), lambda b: (0, 0)),
            pl.BlockSpec((C_OUT, 1), lambda b: (0, 0)),
            pl.BlockSpec((C_OUT, C_PAD), lambda b: (0, 0)),
        ],
        out_specs=pl.BlockSpec((1, C_OUT, HW), lambda b: (b, 0, 0)),
        compiler_params=pltpu.CompilerParams(dimension_semantics=("parallel",)),
    )(x, w1k, b1k, w2k, b2k, wsk)
    return out.reshape(B, C_OUT, H, W)                               # free reshape (NCHW)


def ref_forward(x_nchw, w1, b1, w2, b2, ws):
    """Pure-JAX reference (XLA convs) for correctness check."""
    x = jnp.transpose(x_nchw, (0, 2, 3, 1))
    dn1 = jax.lax.conv_dimension_numbers(x.shape, w1.shape, ("NHWC", "HWIO", "NHWC"))
    h = jax.lax.conv_general_dilated(x, w1, (1, 1), "SAME",
                                     dimension_numbers=dn1) + b1.reshape(1, 1, 1, -1)
    h = jnp.maximum(h, 0.0)
    dn2 = jax.lax.conv_dimension_numbers(h.shape, w2.shape, ("NHWC", "HWIO", "NHWC"))
    m = jax.lax.conv_general_dilated(h, w2, (1, 1), "SAME",
                                     dimension_numbers=dn2) + b2.reshape(1, 1, 1, -1)
    s = jnp.einsum("nhwc,cd->nhwd", x, ws)
    return jnp.transpose(m + s, (0, 3, 1, 2))


if __name__ == "__main__":
    key = jax.random.PRNGKey(0)
    kx, k1, kb1, k2, kb2, ks = jax.random.split(key, 6)

    # Deterministic synthetic parameters (HWIO conv weights, NCHW activations like PyTorch).
    x = jax.random.normal(kx, (B, C_IN, H, W), jnp.float32)
    w1 = 0.1 * jax.random.normal(k1, (3, 3, C_IN, C_MID), jnp.float32)
    b1 = 0.1 * jax.random.normal(kb1, (1, C_MID), jnp.float32)
    w2 = 0.1 * jax.random.normal(k2, (3, 3, C_MID, C_OUT), jnp.float32)
    b2 = 0.1 * jax.random.normal(kb2, (1, C_OUT), jnp.float32)
    ws = 0.1 * jax.random.normal(ks, (C_IN, C_OUT), jnp.float32)

    out = jax.block_until_ready(jax.jit(residual_block)(x, w1, b1, w2, b2, ws))
    ref = jax.block_until_ready(ref_forward(x, w1, b1, w2, b2, ws))

    assert out.shape == (B, C_OUT, H, W), out.shape
    assert jnp.allclose(out, ref, atol=1e-4, rtol=1e-4), float(jnp.max(jnp.abs(out - ref)))
    print("KERNEL_OK")
</pallas_src>

<mosaic_0001>
module attributes {stable_mosaic.version = 11 : i64} {
  func.func @residual_block_kernel(%arg0: i32, %arg1: memref<1x4x256xf32, #tpu.memory_space<vmem>>, %arg2: memref<8x72xf32, #tpu.memory_space<vmem>>, %arg3: memref<8x1xf32, #tpu.memory_space<vmem>>, %arg4: memref<8x72xf32, #tpu.memory_space<vmem>>, %arg5: memref<8x1xf32, #tpu.memory_space<vmem>>, %arg6: memref<8x8xf32, #tpu.memory_space<vmem>>, %arg7: memref<1x8x256xf32, #tpu.memory_space<vmem>>) attributes {dimension_semantics = [#tpu.dimension_semantics<parallel>], iteration_bounds = array<i64: 2>, scalar_prefetch = 0 : i64, scratch_operands = 0 : i64, tpu.core_type = #tpu.core_type<tc>, window_params = [{transform_indices = @transform_0, window_bounds = array<i64: 1, 4, 256>}, {pipeline_mode = #tpu.pipeline_mode<synchronous>, transform_indices = @transform_1, window_bounds = array<i64: 8, 72>}, {pipeline_mode = #tpu.pipeline_mode<synchronous>, transform_indices = @transform_2, window_bounds = array<i64: 8, 1>}, {pipeline_mode = #tpu.pipeline_mode<synchronous>, transform_indices = @transform_3, window_bounds = array<i64: 8, 72>}, {pipeline_mode = #tpu.pipeline_mode<synchronous>, transform_indices = @transform_4, window_bounds = array<i64: 8, 1>}, {pipeline_mode = #tpu.pipeline_mode<synchronous>, transform_indices = @transform_5, window_bounds = array<i64: 8, 8>}, {transform_indices = @transform_6, window_bounds = array<i64: 1, 8, 256>}]} {
    %c0 = arith.constant 0 : index
    %c0_0 = arith.constant 0 : index
    %c0_1 = arith.constant 0 : index
    %0 = vector.load %arg1[%c0, %c0_0, %c0_1] : memref<1x4x256xf32, #tpu.memory_space<vmem>>, vector<1x4x256xf32>
    %1 = vector.shape_cast %0 : vector<1x4x256xf32> to vector<4x256xf32>
    %c0_i32 = arith.constant 0 : i32
    %2 = arith.sitofp %c0_i32 : i32 to f32
    %3 = vector.broadcast %2 : f32 to vector<4x256xf32>
    %4 = tpu.concatenate %1, %3 in 0 : vector<4x256xf32>, vector<4x256xf32> -> vector<8x256xf32>
    %5 = tpu.iota {dimensions = array<i32: 1>} : vector<8x256xi32>
    %c16_i32 = arith.constant 16 : i32
    %c0_i32_2 = arith.constant 0 : i32
    %6 = arith.cmpi eq, %c16_i32, %c0_i32_2 : i32
    %c1_i32 = arith.constant 1 : i32
    %7 = arith.select %6, %c1_i32, %c16_i32 : i32
    %8 = vector.broadcast %7 : i32 to vector<8x256xi32>
    %9 = arith.remsi %5, %8 : vector<8x256xi32>
    %c0_i32_3 = arith.constant 0 : i32
    %10 = vector.broadcast %c0_i32_3 : i32 to vector<8x256xi32>
    %11 = arith.cmpi ne, %9, %10 : vector<8x256xi32>
    %c0_i32_4 = arith.constant 0 : i32
    %12 = vector.broadcast %c0_i32_4 : i32 to vector<8x256xi32>
    %13 = arith.cmpi slt, %9, %12 : vector<8x256xi32>
    %c0_i32_5 = arith.constant 0 : i32
    %14 = arith.cmpi slt, %7, %c0_i32_5 : i32
    %15 = vector.broadcast %14 : i1 to vector<8x256xi1>
    %16 = vector.broadcast %15 : vector<8x256xi1> to vector<8x256xi1>
    %17 = arith.xori %13, %16 : vector<8x256xi1>
    %18 = arith.andi %17, %11 : vector<8x256xi1>
    %19 = vector.broadcast %7 : i32 to vector<8x256xi32>
    %20 = arith.addi %9, %19 : vector<8x256xi32>
    %21 = arith.select %18, %20, %9 : vector<8x256xi1>, vector<8x256xi32>
    %c1_i32_6 = arith.constant 1 : i32
    %22 = vector.broadcast %c1_i32_6 : i32 to vector<8x256xi32>
    %23 = arith.cmpi sge, %21, %22 : vector<8x256xi32>
    %c14_i32 = arith.constant 14 : i32
    %24 = vector.broadcast %c14_i32 : i32 to vector<8x256xi32>
    %25 = arith.cmpi sle, %21, %24 : vector<8x256xi32>
    %c0_i32_7 = arith.constant 0 : i32
    %26 = arith.sitofp %c0_i32_7 : i32 to f32
    %27 = vector.broadcast %26 : f32 to vector<8x17xf32>
    %28 = tpu.concatenate %27, %4 in 1 : vector<8x17xf32>, vector<8x256xf32> -> vector<8x273xf32>
    %29 = vector.broadcast %26 : f32 to vector<8x17xf32>
    %30 = tpu.concatenate %28, %29 in 1 : vector<8x273xf32>, vector<8x17xf32> -> vector<8x290xf32>
    %31 = vector.extract_strided_slice %30 {offsets = [0, 0], sizes = [8, 256], strides = [1, 1]} : vector<8x290xf32> to vector<8x256xf32>
    %cst = arith.constant 0.000000e+00 : f32
    %32 = vector.broadcast %cst : f32 to vector<8x256xf32>
    %33 = arith.select %23, %31, %32 : vector<8x256xi1>, vector<8x256xf32>
    %34 = vector.extract_strided_slice %30 {offsets = [0, 1], sizes = [8, 256], strides = [1, 1]} : vector<8x290xf32> to vector<8x256xf32>
    %35 = vector.extract_strided_slice %30 {offsets = [0, 2], sizes = [8, 256], strides = [1, 1]} : vector<8x290xf32> to vector<8x256xf32>
    %cst_8 = arith.constant 0.000000e+00 : f32
    %36 = vector.broadcast %cst_8 : f32 to vector<8x256xf32>
    %37 = arith.select %25, %35, %36 : vector<8x256xi1>, vector<8x256xf32>
    %38 = vector.extract_strided_slice %30 {offsets = [0, 16], sizes = [8, 256], strides = [1, 1]} : vector<8x290xf32> to vector<8x256xf32>
    %cst_9 = arith.constant 0.000000e+00 : f32
    %39 = vector.broadcast %cst_9 : f32 to vector<8x256xf32>
    %40 = arith.select %23, %38, %39 : vector<8x256xi1>, vector<8x256xf32>
    %41 = vector.extract_strided_slice %30 {offsets = [0, 17], sizes = [8, 256], strides = [1, 1]} : vector<8x290xf32> to vector<8x256xf32>
    %42 = vector.extract_strided_slice %30 {offsets = [0, 18], sizes = [8, 256], strides = [1, 1]} : vector<8x290xf32> to vector<8x256xf32>
    %cst_10 = arith.constant 0.000000e+00 : f32
    %43 = vector.broadcast %cst_10 : f32 to vector<8x256xf32>
    %44 = arith.select %25, %42, %43 : vector<8x256xi1>, vector<8x256xf32>
    %45 = vector.extract_strided_slice %30 {offsets = [0, 32], sizes = [8, 256], strides = [1, 1]} : vector<8x290xf32> to vector<8x256xf32>
    %cst_11 = arith.constant 0.000000e+00 : f32
    %46 = vector.broadcast %cst_11 : f32 to vector<8x256xf32>
    %47 = arith.select %23, %45, %46 : vector<8x256xi1>, vector<8x256xf32>
    %48 = vector.extract_strided_slice %30 {offsets = [0, 33], sizes = [8, 256], strides = [1, 1]} : vector<8x290xf32> to vector<8x256xf32>
    %49 = vector.extract_strided_slice %30 {offsets = [0, 34], sizes = [8, 256], strides = [1, 1]} : vector<8x290xf32> to vector<8x256xf32>
    %cst_12 = arith.constant 0.000000e+00 : f32
    %50 = vector.broadcast %cst_12 : f32 to vector<8x256xf32>
    %51 = arith.select %25, %49, %50 : vector<8x256xi1>, vector<8x256xf32>
    %52 = tpu.concatenate %33, %34, %37, %40, %41, %44, %47, %48, %51 in 0 : vector<8x256xf32>, vector<8x256xf32>, vector<8x256xf32>, vector<8x256xf32>, vector<8x256xf32>, vector<8x256xf32>, vector<8x256xf32>, vector<8x256xf32>, vector<8x256xf32> -> vector<72x256xf32>
    %c0_13 = arith.constant 0 : index
    %c0_14 = arith.constant 0 : index
    %53 = vector.load %arg2[%c0_13, %c0_14] : memref<8x72xf32, #tpu.memory_space<vmem>>, vector<8x72xf32>
    %cst_15 = arith.constant dense<0.000000e+00> : vector<8x256xf32>
    %54 = tpu.matmul %53, %52, %cst_15 {dimension_numbers = #tpu.dot_dimension_numbers<[1], [0], [0], [1], [0, 0, 1, 1], [], []>} : vector<8x72xf32>, vector<72x256xf32>, vector<8x256xf32> -> vector<8x256xf32>
    %c0_16 = arith.constant 0 : index
    %c0_17 = arith.constant 0 : index
    %55 = vector.load %arg3[%c0_16, %c0_17] : memref<8x1xf32, #tpu.memory_space<vmem>>, vector<8x1xf32>
    %56 = vector.broadcast %55 : vector<8x1xf32> to vector<8x256xf32>
    %57 = arith.addf %54, %56 : vector<8x256xf32>
    %cst_18 = arith.constant 0.000000e+00 : f32
    %58 = vector.broadcast %cst_18 : f32 to vector<8x256xf32>
    %59 = arith.maximumf %57, %58 : vector<8x256xf32>
    %c0_i32_19 = arith.constant 0 : i32
    %60 = arith.sitofp %c0_i32_19 : i32 to f32
    %61 = vector.broadcast %60 : f32 to vector<8x17xf32>
    %62 = tpu.concatenate %61, %59 in 1 : vector<8x17xf32>, vector<8x256xf32> -> vector<8x273xf32>
    %63 = vector.broadcast %60 : f32 to vector<8x17xf32>
    %64 = tpu.concatenate %62, %63 in 1 : vector<8x273xf32>, vector<8x17xf32> -> vector<8x290xf32>
    %65 = vector.extract_strided_slice %64 {offsets = [0, 0], sizes = [8, 256], strides = [1, 1]} : vector<8x290xf32> to vector<8x256xf32>
    %cst_20 = arith.constant 0.000000e+00 : f32
    %66 = vector.broadcast %cst_20 : f32 to vector<8x256xf32>
    %67 = arith.select %23, %65, %66 : vector<8x256xi1>, vector<8x256xf32>
    %68 = vector.extract_strided_slice %64 {offsets = [0, 1], sizes = [8, 256], strides = [1, 1]} : vector<8x290xf32> to vector<8x256xf32>
    %69 = vector.extract_strided_slice %64 {offsets = [0, 2], sizes = [8, 256], strides = [1, 1]} : vector<8x290xf32> to vector<8x256xf32>
    %cst_21 = arith.constant 0.000000e+00 : f32
    %70 = vector.broadcast %cst_21 : f32 to vector<8x256xf32>
    %71 = arith.select %25, %69, %70 : vector<8x256xi1>, vector<8x256xf32>
    %72 = vector.extract_strided_slice %64 {offsets = [0, 16], sizes = [8, 256], strides = [1, 1]} : vector<8x290xf32> to vector<8x256xf32>
    %cst_22 = arith.constant 0.000000e+00 : f32
    %73 = vector.broadcast %cst_22 : f32 to vector<8x256xf32>
    %74 = arith.select %23, %72, %73 : vector<8x256xi1>, vector<8x256xf32>
    %75 = vector.extract_strided_slice %64 {offsets = [0, 17], sizes = [8, 256], strides = [1, 1]} : vector<8x290xf32> to vector<8x256xf32>
    %76 = vector.extract_strided_slice %64 {offsets = [0, 18], sizes = [8, 256], strides = [1, 1]} : vector<8x290xf32> to vector<8x256xf32>
    %cst_23 = arith.constant 0.000000e+00 : f32
    %77 = vector.broadcast %cst_23 : f32 to vector<8x256xf32>
    %78 = arith.select %25, %76, %77 : vector<8x256xi1>, vector<8x256xf32>
    %79 = vector.extract_strided_slice %64 {offsets = [0, 32], sizes = [8, 256], strides = [1, 1]} : vector<8x290xf32> to vector<8x256xf32>
    %cst_24 = arith.constant 0.000000e+00 : f32
    %80 = vector.broadcast %cst_24 : f32 to vector<8x256xf32>
    %81 = arith.select %23, %79, %80 : vector<8x256xi1>, vector<8x256xf32>
    %82 = vector.extract_strided_slice %64 {offsets = [0, 33], sizes = [8, 256], strides = [1, 1]} : vector<8x290xf32> to vector<8x256xf32>
    %83 = vector.extract_strided_slice %64 {offsets = [0, 34], sizes = [8, 256], strides = [1, 1]} : vector<8x290xf32> to vector<8x256xf32>
    %cst_25 = arith.constant 0.000000e+00 : f32
    %84 = vector.broadcast %cst_25 : f32 to vector<8x256xf32>
    %85 = arith.select %25, %83, %84 : vector<8x256xi1>, vector<8x256xf32>
    %86 = tpu.concatenate %67, %68, %71, %74, %75, %78, %81, %82, %85 in 0 : vector<8x256xf32>, vector<8x256xf32>, vector<8x256xf32>, vector<8x256xf32>, vector<8x256xf32>, vector<8x256xf32>, vector<8x256xf32>, vector<8x256xf32>, vector<8x256xf32> -> vector<72x256xf32>
    %c0_26 = arith.constant 0 : index
    %c0_27 = arith.constant 0 : index
    %87 = vector.load %arg4[%c0_26, %c0_27] : memref<8x72xf32, #tpu.memory_space<vmem>>, vector<8x72xf32>
    %cst_28 = arith.constant dense<0.000000e+00> : vector<8x256xf32>
    %88 = tpu.matmul %87, %86, %cst_28 {dimension_numbers = #tpu.dot_dimension_numbers<[1], [0], [0], [1], [0, 0, 1, 1], [], []>} : vector<8x72xf32>, vector<72x256xf32>, vector<8x256xf32> -> vector<8x256xf32>
    %c0_29 = arith.constant 0 : index
    %c0_30 = arith.constant 0 : index
    %89 = vector.load %arg5[%c0_29, %c0_30] : memref<8x1xf32, #tpu.memory_space<vmem>>, vector<8x1xf32>
    %90 = vector.broadcast %89 : vector<8x1xf32> to vector<8x256xf32>
    %91 = arith.addf %88, %90 : vector<8x256xf32>
    %c0_31 = arith.constant 0 : index
    %c0_32 = arith.constant 0 : index
    %92 = vector.load %arg6[%c0_31, %c0_32] : memref<8x8xf32, #tpu.memory_space<vmem>>, vector<8x8xf32>
    %cst_33 = arith.constant dense<0.000000e+00> : vector<8x256xf32>
    %93 = tpu.matmul %92, %4, %cst_33 {dimension_numbers = #tpu.dot_dimension_numbers<[1], [0], [0], [1], [0, 0, 1, 1], [], []>} : vector<8x8xf32>, vector<8x256xf32>, vector<8x256xf32> -> vector<8x256xf32>
    %94 = arith.addf %91, %93 : vector<8x256xf32>
    %c0_34 = arith.constant 0 : index
    %c0_35 = arith.constant 0 : index
    %c0_36 = arith.constant 0 : index
    %95 = vector.load %arg7[%c0_34, %c0_35, %c0_36] : memref<1x8x256xf32, #tpu.memory_space<vmem>>, vector<1x8x256xf32>
    %96 = vector.shape_cast %95 : vector<1x8x256xf32> to vector<8x256xf32>
    %97 = vector.shape_cast %94 : vector<8x256xf32> to vector<1x8x256xf32>
    tpu.vector_store %arg7[%c0_34, %c0_35, %c0_36], %97 {strides = array<i32>} : memref<1x8x256xf32, #tpu.memory_space<vmem>>, vector<1x8x256xf32>,
    return
  }
  func.func @transform_0(%arg0: i32) -> (i32, i32, i32) {
    %c0_i32 = arith.constant 0 : i32
    %c0_i32_0 = arith.constant 0 : i32
    %c0_i32_1 = arith.constant 0 : i32
    return %arg0, %c0_i32, %c0_i32_0 : i32, i32, i32
  }
  func.func @transform_1(%arg0: i32) -> (i32, i32) {
    %c0_i32 = arith.constant 0 : i32
    %c0_i32_0 = arith.constant 0 : i32
    %c0_i32_1 = arith.constant 0 : i32
    return %c0_i32, %c0_i32_0 : i32, i32
  }
  func.func @transform_2(%arg0: i32) -> (i32, i32) {
    %c0_i32 = arith.constant 0 : i32
    %c0_i32_0 = arith.constant 0 : i32
    %c0_i32_1 = arith.constant 0 : i32
    return %c0_i32, %c0_i32_0 : i32, i32
  }
  func.func @transform_3(%arg0: i32) -> (i32, i32) {
    %c0_i32 = arith.constant 0 : i32
    %c0_i32_0 = arith.constant 0 : i32
    %c0_i32_1 = arith.constant 0 : i32
    return %c0_i32, %c0_i32_0 : i32, i32
  }
  func.func @transform_4(%arg0: i32) -> (i32, i32) {
    %c0_i32 = arith.constant 0 : i32
    %c0_i32_0 = arith.constant 0 : i32
    %c0_i32_1 = arith.constant 0 : i32
    return %c0_i32, %c0_i32_0 : i32, i32
  }
  func.func @transform_5(%arg0: i32) -> (i32, i32) {
    %c0_i32 = arith.constant 0 : i32
    %c0_i32_0 = arith.constant 0 : i32
    %c0_i32_1 = arith.constant 0 : i32
    return %c0_i32, %c0_i32_0 : i32, i32
  }
  func.func @transform_6(%arg0: i32) -> (i32, i32, i32) {
    %c0_i32 = arith.constant 0 : i32
    %c0_i32_0 = arith.constant 0 : i32
    %c0_i32_1 = arith.constant 0 : i32
    return %arg0, %c0_i32, %c0_i32_0 : i32, i32, i32
  }
}

</mosaic_0001>

<llo_original>
// kernel: residual_block.1
$region0: #{residual_block.1}
  #allocation0 [shape = 'u32[]', space=smem, size = 0x4, offset = 0x4, fixed_abs, tag = 'smem constant byte address 0x4 - core index']
  #allocation1 [shape = 'u32[72,128]{1,0:T(1,128)}', space=vmem, size = 0x9000, scoped, tag = 'internal scratch']
  %s0 = inlined_call_operand.vmem [shape: f32[2,4,256], index: 0, kind: input, shape index: {}]
  %s1 = inlined_call_operand.vmem [shape: f32[8,72], index: 1, kind: input, shape index: {}]
  %s2 = inlined_call_operand.vmem [shape: f32[8,1], index: 2, kind: input, shape index: {}]
  %s3 = inlined_call_operand.vmem [shape: f32[8,72], index: 3, kind: input, shape index: {}]
  %s4 = inlined_call_operand.vmem [shape: f32[8,1], index: 4, kind: input, shape index: {}]
  %s5 = inlined_call_operand.vmem [shape: f32[8,8], index: 5, kind: input, shape index: {}]
  %s6 = inlined_call_operand.vmem [shape: f32[2,8,256], index: 6, kind: output, shape index: {}]
  %s7 = sld [smem:[#allocation0]]
  $region57: #{residual_block.1} parent=0
    _
  %s9 = ssub.s32 1, %s7
  %s10 = scalar_select 0, %s9, %s7
  loop: start=0, step=1, limit=4
  $region2: #{residual_block.1} parent=0 // loop_pre_header
    _
  $region3: #{residual_block.1} parent=0 // loop_header
    %s12 = sphi 0, %s16
    %p13 = scmp.ge.s32.totalorder %s12, 4
    %s22 = sphi 0, %s24
    %s25 = sphi 0, %s22
    %s26 = sphi 0, %s25
    %s42 = sphi 0, %s26
    %s46 = sphi 0, %s46
    %s48 = sphi 0, %s46
    %s49 = sphi 0, %s48
    %s63 = sphi 0, %s49
    %s67 = sphi 0, %s67
    %s69 = sphi 0, %s67
    %s70 = sphi 0, %s69
    %s84 = sphi 0, %s70
    %s88 = sphi 0, %s88
    %s90 = sphi 0, %s88
    %s91 = sphi 0, %s90
    %s105 = sphi 0, %s91
    %s109 = sphi 0, %s109
    %s111 = sphi 0, %s109
    %s112 = sphi 0, %s111
    %s126 = sphi 0, %s112
    %s130 = sphi 0, %s130
    %s132 = sphi 0, %s130
    %s133 = sphi 0, %s132
    %s147 = sphi 0, %s133
    %s153 = sphi 0, %s155
    %s156 = sphi 0, %s153
    %s157 = sphi 0, %s156
    %s173 = sphi 0, %s157
  $region4: #{residual_block.1} parent=0 // loop_header_branch
    %15 = sbr.rel (%p13) target = $region8
  $region5: #{residual_block.1} parent=0 // loop_body
    %s17 = ssub.s32 %s12, 1
    %s18 = ssub.s32 %s12, 2
    %s19 = sadd.s32 %s12, 1
    %s20 = ssub.s32 %s12, %s19
    %p21 = scmp.eq.s32.totalorder %s20, 0
    %s23 = sadd.s32 %s22, 1
    %s24 = scalar_select %p21, %s22, %s23
    %p27 = pneg %p21
    %p28 = scmp.eq.s32.totalorder %s12, 1
    %p29 = por %p27, %p28
    %p30 = scmp.ne.s32.totalorder %s22, %s25
    %p31 = scmp.eq.s32.totalorder %s12, 0
    %p32 = por %p30, %p31
    %p33 = scmp.ne.s32.totalorder %s22, %s25
    %p34 = scmp.eq.s32.totalorder %s17, 1
    %p35 = por %p33, %p34
    %p36 = scmp.ne.s32.totalorder %s25, %s26
    %p37 = scmp.eq.s32.totalorder %s17, 0
    %p38 = por %p36, %p37
    %p39 = scmp.ne.s32.totalorder %s25, %s26
    %p40 = scmp.eq.s32.totalorder %s18, 1
    %p41 = por %p39, %p40
    %p43 = scmp.ne.s32.totalorder %s26, %s42
    %p44 = scmp.eq.s32.totalorder %s18, 0
    %p45 = por %p43, %p44
    %s47 = sadd.s32 %s46, 1
    %p50 = scmp.eq.s32.totalorder %s12, 1
    %p51 = scmp.ne.s32.totalorder %s46, %s48
    %p52 = scmp.eq.s32.totalorder %s12, 0
    %p53 = por %p51, %p52
    %p54 = scmp.ne.s32.totalorder %s46, %s48
    %p55 = scmp.eq.s32.totalorder %s17, 1
    %p56 = por %p54, %p55
    %p57 = scmp.ne.s32.totalorder %s48, %s49
    %p58 = scmp.eq.s32.totalorder %s17, 0
    %p59 = por %p57, %p58
    %p60 = scmp.ne.s32.totalorder %s48, %s49
    %p61 = scmp.eq.s32.totalorder %s18, 1
    %p62 = por %p60, %p61
    %p64 = scmp.ne.s32.totalorder %s49, %s63
    %p65 = scmp.eq.s32.totalorder %s18, 0
    %p66 = por %p64, %p65
    %s68 = sadd.s32 %s67, 1
    %p71 = scmp.eq.s32.totalorder %s12, 1
    %p72 = scmp.ne.s32.totalorder %s67, %s69
    %p73 = scmp.eq.s32.totalorder %s12, 0
    %p74 = por %p72, %p73
    %p75 = scmp.ne.s32.totalorder %s67, %s69
    %p76 = scmp.eq.s32.totalorder %s17, 1
    %p77 = por %p75, %p76
    %p78 = scmp.ne.s32.totalorder %s69, %s70
    %p79 = scmp.eq.s32.totalorder %s17, 0
    %p80 = por %p78, %p79
    %p81 = scmp.ne.s32.totalorder %s69, %s70
    %p82 = scmp.eq.s32.totalorder %s18, 1
    %p83 = por %p81, %p82
    %p85 = scmp.ne.s32.totalorder %s70, %s84
    %p86 = scmp.eq.s32.totalorder %s18, 0
    %p87 = por %p85, %p86
    %s89 = sadd.s32 %s88, 1
    %p92 = scmp.eq.s32.totalorder %s12, 1
    %p93 = scmp.ne.s32.totalorder %s88, %s90
    %p94 = scmp.eq.s32.totalorder %s12, 0
    %p95 = por %p93, %p94
    %p96 = scmp.ne.s32.totalorder %s88, %s90
    %p97 = scmp.eq.s32.totalorder %s17, 1
    %p98 = por %p96, %p97
    %p99 = scmp.ne.s32.totalorder %s90, %s91
    %p100 = scmp.eq.s32.totalorder %s17, 0
    %p101 = por %p99, %p100
    %p102 = scmp.ne.s32.totalorder %s90, %s91
    %p103 = scmp.eq.s32.totalorder %s18, 1
    %p104 = por %p102, %p103
    %p106 = scmp.ne.s32.totalorder %s91, %s105
    %p107 = scmp.eq.s32.totalorder %s18, 0
    %p108 = por %p106, %p107
    %s110 = sadd.s32 %s109, 1
    %p113 = scmp.eq.s32.totalorder %s12, 1
    %p114 = scmp.ne.s32.totalorder %s109, %s111
    %p115 = scmp.eq.s32.totalorder %s12, 0
    %p116 = por %p114, %p115
    %p117 = scmp.ne.s32.totalorder %s109, %s111
    %p118 = scmp.eq.s32.totalorder %s17, 1
    %p119 = por %p117, %p118
    %p120 = scmp.ne.s32.totalorder %s111, %s112
    %p121 = scmp.eq.s32.totalorder %s17, 0
    %p122 = por %p120, %p121
    %p123 = scmp.ne.s32.totalorder %s111, %s112
    %p124 = scmp.eq.s32.totalorder %s18, 1
    %p125 = por %p123, %p124
    %p127 = scmp.ne.s32.totalorder %s112, %s126
    %p128 = scmp.eq.s32.totalorder %s18, 0
    %p129 = por %p127, %p128
    %s131 = sadd.s32 %s130, 1
    %p134 = scmp.eq.s32.totalorder %s12, 1
    %p135 = scmp.ne.s32.totalorder %s130, %s132
    %p136 = scmp.eq.s32.totalorder %s12, 0
    %p137 = por %p135, %p136
    %p138 = scmp.ne.s32.totalorder %s130, %s132
    %p139 = scmp.eq.s32.totalorder %s17, 1
    %p140 = por %p138, %p139
    %p141 = scmp.ne.s32.totalorder %s132, %s133
    %p142 = scmp.eq.s32.totalorder %s17, 0
    %p143 = por %p141, %p142
    %p144 = scmp.ne.s32.totalorder %s132, %s133
    %p145 = scmp.eq.s32.totalorder %s18, 1
    %p146 = por %p144, %p145
    %p148 = scmp.ne.s32.totalorder %s133, %s147
    %p149 = scmp.eq.s32.totalorder %s18, 0
    %p150 = por %p148, %p149
    %s151 = ssub.s32 %s12, %s19
    %p152 = scmp.eq.s32.totalorder %s151, 0
    %s154 = sadd.s32 %s153, 1
    %s155 = scalar_select %p152, %s153, %s154
    %p158 = pneg %p152
    %p159 = scmp.eq.s32.totalorder %s12, 1
    %p160 = por %p158, %p159
    %p161 = scmp.ne.s32.totalorder %s153, %s156
    %p162 = scmp.eq.s32.totalorder %s12, 0
    %p163 = por %p161, %p162
    %p164 = scmp.ne.s32.totalorder %s153, %s156
    %p165 = scmp.eq.s32.totalorder %s17, 1
    %p166 = por %p164, %p165
    %p167 = scmp.ne.s32.totalorder %s156, %s157
    %p168 = scmp.eq.s32.totalorder %s17, 0
    %p169 = por %p167, %p168
    %p170 = scmp.ne.s32.totalorder %s156, %s157
    %p171 = scmp.eq.s32.totalorder %s18, 1
    %p172 = por %p170, %p171
    %p174 = scmp.ne.s32.totalorder %s157, %s173
    %p175 = scmp.eq.s32.totalorder %s18, 0
    %p176 = por %p174, %p175
    %p177 = scmp.le.s32.totalorder 1, %s12
    %p178 = scmp.lt.s32.totalorder %s12, 3
    %p179 = pnand %p177, %p178
    %p180 = pneg %p179
    // Predicated region
    $region9: #{residual_block.1} parent=5 // pred_check
      _
    $region10: #{residual_block.1} parent=5 // pred_check_branch
      %182 = sbr.rel (%p179) target = $region12
    $region11: #{residual_block.1} parent=5 // pred_region
      %s183 = ssub.s32 %s12, 1
      // Predicated region
      $region13: #{residual_block.1} parent=11 // pred_check
        %p184 = pneg %p59
      $region14: #{residual_block.1} parent=11 // pred_check_branch
        %186 = sbr.rel (%p184) target = $region16
      $region15: #{residual_block.1} parent=11 // pred_region
        _
      $region16: #{residual_block.1} parent=11 // pred_fallthru
        _
      // Predicated region
      $region17: #{residual_block.1} parent=11 // pred_check
        %p187 = pneg %p80
      $region18: #{residual_block.1} parent=11 // pred_check_branch
        %189 = sbr.rel (%p187) target = $region20
      $region19: #{residual_block.1} parent=11 // pred_region
        _
      $region20: #{residual_block.1} parent=11 // pred_fallthru
        _
      // Predicated region
      $region21: #{residual_block.1} parent=11 // pred_check
        %p190 = pneg %p101
      $region22: #{residual_block.1} parent=11 // pred_check_branch
        %192 = sbr.rel (%p190) target = $region24
      $region23: #{residual_block.1} parent=11 // pred_region
        _
      $region24: #{residual_block.1} parent=11 // pred_fallthru
        _
      // Predicated region
      $region25: #{residual_block.1} parent=11 // pred_check
        %p193 = pneg %p122
      $region26: #{residual_block.1} parent=11 // pred_check_branch
        %195 = sbr.rel (%p193) target = $region28
      $region27: #{residual_block.1} parent=11 // pred_region
        _
      $region28: #{residual_block.1} parent=11 // pred_fallthru
        _
      // Predicated region
      $region29: #{residual_block.1} parent=11 // pred_check
        %p196 = pneg %p143
      $region30: #{residual_block.1} parent=11 // pred_check_branch
        %198 = sbr.rel (%p196) target = $region32
      $region31: #{residual_block.1} parent=11 // pred_region
        _
      $region32: #{residual_block.1} parent=11 // pred_fallthru
        _
    $region12: #{residual_block.1} parent=5 // pred_fallthru
      _
    %p199 = scmp.lt.s32.totalorder %s12, 2
    // Predicated region
    $region33: #{residual_block.1} parent=5 // pred_check
      %p200 = pneg %p199
    $region34: #{residual_block.1} parent=5 // pred_check_branch
      %202 = sbr.rel (%p200) target = $region36
    $region35: #{residual_block.1} parent=5 // pred_region
      // Predicated region
      $region37: #{residual_block.1} parent=35 // pred_check
        %p203 = pneg %p32
      $region38: #{residual_block.1} parent=35 // pred_check_branch
        %205 = sbr.rel (%p203) target = $region40
      $region39: #{residual_block.1} parent=35 // pred_region
        %p206 = scmp.lt.s32.totalorder %s12, 1
        %s207 = scalar_select %p206, %s12, 1
        %s208 = smul.addr %s207, 2
        %s209 = smul.addr %s208, 4
        %s210 = scalar_lea.vmem %s0, %s209
      $region40: #{residual_block.1} parent=35 // pred_fallthru
        _
    $region36: #{residual_block.1} parent=5 // pred_fallthru
      _
    %p211 = scmp.le.s32.totalorder 1, %s12
    %p212 = scmp.lt.s32.totalorder %s12, 3
    %p213 = pnand %p211, %p212
    %p214 = pneg %p213
    // Predicated region
    $region41: #{residual_block.1} parent=5 // pred_check
      _
    $region42: #{residual_block.1} parent=5 // pred_check_branch
      %216 = sbr.rel (%p213) target = $region44
    $region43: #{residual_block.1} parent=5 // pred_region
      %s217 = ssub.s32 %s12, 1
      %p218 = scmp.lt.s32.totalorder %s17, 1
      %s219 = scalar_select %p218, %s17, 1
      %s220 = smul.addr %s219, 2
      %s221 = smul.addr %s220, 4
      %s222 = scalar_lea.vmem %s0, %s221
      %p223 = pneg %p38
      %p224 = pneg %p35
      %p225 = pneg %p59
      %p226 = pneg %p56
      %p227 = pneg %p80
      %p228 = pneg %p77
      %p229 = pneg %p101
      %p230 = pneg %p98
      %p231 = pneg %p122
      %p232 = pneg %p119
      %p233 = pneg %p143
      %p234 = pneg %p140
      %p235 = pneg %p169
      %p236 = pneg %p166
      %p237 = scmp.lt.s32.totalorder %s17, 1
      %s238 = scalar_select %p237, %s17, 1
      %s239 = smul.addr %s238, 2
      %s240 = smul.addr %s239, 8
      %s241 = scalar_lea.vmem %s6, %s240
      %p242 = scmp.lt.s32.totalorder %s17, 1
      %s243 = scalar_select %p242, %s17, 1
      %s244 = smul.addr %s243, 2
      %s245 = smul.addr %s244, 4
      %s246 = scalar_lea.vmem %s0, %s245
      %p247 = scmp.lt.s32.totalorder %s17, 1
      %s248 = scalar_select %p247, %s17, 1
      %s249 = smul.addr %s248, 2
      %s250 = smul.addr %s249, 8
      %s251 = scalar_lea.vmem %s6, %s250
      %v252 = vld [vmem:[%s246] sm:$0xff]
      %254 = vst [vmem:[#allocation1] ss:$2 sm:$0xff] %v252
      %v255 = vld.sshfl [vmem:[#allocation1] sm:$0xff pattern:$0x75316420]
      %v256 = vld.sshfl [vmem:[#allocation1 + $0x8] sm:$0xff pattern:$0x75316420]
      %vm259 = vcmask 1043456
      %v260 = vsel %vm259, %v255, 0.0
      %v261 = vsel %vm259, %v256, 0.0
      %v262 = vlaneseq
      %v263 = vand.u32 %v262, 127
      %v264 = vadd.s32 %v263, 128
      %vm265 = vcmp.lt.s32.totalorder %v263, 0
      %v266 = vsub.s32 0, %v263
      %v267 = vsel %vm265, %v266, %v263
      %v268 = vshrl.u32 %v267, 4
      %v269 = vand.u32 %v267, 15
      %v270 = vsub.s32 0, %v269
      %v271 = vsel %vm265, %v270, %v269
      %vm272 = vcmp.lt.s32.totalorder %v264, 0
      %v273 = vsub.s32 0, %v264
      %v274 = vsel %vm272, %v273, %v264
      %v275 = vshrl.u32 %v274, 4
      %v276 = vand.u32 %v274, 15
      %v277 = vsub.s32 0, %v276
      %v278 = vsel %vm272, %v277, %v276
      %vm279 = vcmp.ne.s32.totalorder %v271, 0
      %vm280 = vcmp.ne.s32.totalorder %v278, 0
      %vm281 = vcmp.lt.s32.totalorder %v271, 0
      %vm282 = vcmp.lt.s32.totalorder %v278, 0
      %vm283 = vmand %vm281, %vm279
      %vm284 = vmand %vm282, %vm280
      %v285 = vadd.s32 %v271, 16
      %v286 = vadd.s32 %v278, 16
      %v287 = vsel %vm283, %v285, %v271
      %v288 = vsel %vm284, %v286, %v278
      %vm289 = vcmp.ge.s32.totalorder %v287, 1
      %vm290 = vcmp.ge.s32.totalorder %v288, 1
      %vm291 = vcmp.le.s32.totalorder %v287, 14
      %vm292 = vcmp.le.s32.totalorder %v288, 14
      %295 = vrot.lane.b32.xlu0 %v260, 17
      %v296 = vpop.permute.xlu0 %295
      %297 = vrot.lane.b32.xlu0 %v261, 17
      %v298 = vpop.permute.xlu0 %297
      %vm299 = vcmask 138240
      %v300 = vsel %vm299, %v296, %v298
      %v304 = vsel %vm299, 0.0, %v296
      %v305 = vsel %vm299, %v298, 0.0
      %v306 = vsel %vm289, %v304, 0.0
      %v307 = vsel %vm290, %v300, 0.0
      %310 = vrot.lane.b32.xlu0 %v304, 126
      %v311 = vpop.permute.xlu0 %310
      %312 = vrot.lane.b32.xlu0 %v300, 126
      %v313 = vpop.permute.xlu0 %312
      %314 = vrot.lane.b32.xlu0 %v305, 126
      %v315 = vpop.permute.xlu0 %314
      %vm316 = vcmask 1031168
      %v317 = vsel %vm316, %v311, %v313
      %v318 = vsel %vm316, %v313, %v315
      %v321 = vsel %vm291, %v317, 0.0
      %v322 = vsel %vm292, %v318, 0.0
      %323 = vrot.lane.b32.xlu0 %v304, 112
      %v324 = vpop.permute.xlu0 %323
      %325 = vrot.lane.b32.xlu0 %v300, 112
      %v326 = vpop.permute.xlu0 %325
      %327 = vrot.lane.b32.xlu0 %v305, 112
      %v328 = vpop.permute.xlu0 %327
      %vm329 = vcmask 916480
      %v330 = vsel %vm329, %v324, %v326
      %v331 = vsel %vm329, %v326, %v328
      %v334 = vsel %vm289, %v330, 0.0
      %v335 = vsel %vm290, %v331, 0.0
      %336 = vrot.lane.b32.xlu0 %v304, 110
      %v337 = vpop.permute.xlu0 %336
      %338 = vrot.lane.b32.xlu0 %v300, 110
      %v339 = vpop.permute.xlu0 %338
      %340 = vrot.lane.b32.xlu0 %v305, 110
      %v341 = vpop.permute.xlu0 %340
      %vm342 = vcmask 900096
      %v343 = vsel %vm342, %v337, %v339
      %v344 = vsel %vm342, %v339, %v341
      %v347 = vsel %vm291, %v343, 0.0
      %v348 = vsel %vm292, %v344, 0.0
      %349 = vrot.lane.b32.xlu0 %v304, 96
      %v350 = vpop.permute.xlu0 %349
      %351 = vrot.lane.b32.xlu0 %v300, 96
      %v352 = vpop.permute.xlu0 %351
      %353 = vrot.lane.b32.xlu0 %v305, 96
      %v354 = vpop.permute.xlu0 %353
      %vm355 = vcmask 785408
      %v356 = vsel %vm355, %v350, %v352
      %v357 = vsel %vm355, %v352, %v354
      %v360 = vsel %vm289, %v356, 0.0
      %v361 = vsel %vm290, %v357, 0.0
      %362 = vrot.lane.b32.xlu0 %v304, 94
      %v363 = vpop.permute.xlu0 %362
      %364 = vrot.lane.b32.xlu0 %v300, 94
      %v365 = vpop.permute.xlu0 %364
      %366 = vrot.lane.b32.xlu0 %v305, 94
      %v367 = vpop.permute.xlu0 %366
      %vm368 = vcmask 769024
      %v369 = vsel %vm368, %v363, %v365
      %v370 = vsel %vm368, %v365, %v367
      %v373 = vsel %vm291, %v369, 0.0
      %v374 = vsel %vm292, %v370, 0.0
      %375 = vrot.lane.b32.xlu0 %v304, 127
      %v376 = vpop.permute.xlu0 %375
      %377 = vrot.lane.b32.xlu0 %v300, 127
      %v378 = vpop.permute.xlu0 %377
      %379 = vrot.lane.b32.xlu0 %v305, 127
      %v380 = vpop.permute.xlu0 %379
      %vm381 = vcmask 1039360
      %v382 = vsel %vm381, %v376, %v378
      %v383 = vsel %vm381, %v378, %v380
      %386 = vrot.lane.b32.xlu0 %v304, 111
      %v387 = vpop.permute.xlu0 %386
      %388 = vrot.lane.b32.xlu0 %v300, 111
      %v389 = vpop.permute.xlu0 %388
      %390 = vrot.lane.b32.xlu0 %v305, 111
      %v391 = vpop.permute.xlu0 %390
      %vm392 = vcmask 908288
      %v393 = vsel %vm392, %v387, %v389
      %v394 = vsel %vm392, %v389, %v391
      %397 = vrot.lane.b32.xlu0 %v304, 95
      %v398 = vpop.permute.xlu0 %397
      %399 = vrot.lane.b32.xlu0 %v300, 95
      %v400 = vpop.permute.xlu0 %399
      %401 = vrot.lane.b32.xlu0 %v305, 95
      %v402 = vpop.permute.xlu0 %401
      %vm403 = vcmask 777216
      %v404 = vsel %vm403, %v398, %v400
      %v405 = vsel %vm403, %v400, %v402
      %v408 = vld [vmem:[%s1] sm:$0xff]
      %v409 = vld [vmem:[%s2] sm:$0xff]
      %411 = vset.pattern.permute.xlu0 0
      %412 = vperm.xlu0 %411, %v409
      %v413 = vpop.permute.xlu0 %412
      %vm415 = vcmask 588800
      %v417 = vsel %vm415, %v408, 0
      %419 = vmatpush.msra.mxu0 0.0
      %420 = vmatpush.msra.mxu0 0.0
      %421 = vmatpush.msra.mxu0 0.0
      %422 = vmatpush.msra.mxu0 0.0
      %423 = vmatpush.msra.mxu0 0.0
      %424 = vmatpush.msra.mxu0 0.0
      %425 = vmatpush.msra.mxu0 0.0
      %426 = vmatpush.msra.mxu0 %v373
      %427 = vmatpush.msra.mxu0 %v404
      %428 = vmatpush.msra.mxu0 %v360
      %429 = vmatpush.msra.mxu0 %v347
      %430 = vmatpush.msra.mxu0 %v393
      %431 = vmatpush.msra.mxu0 %v334
      %432 = vmatpush.msra.mxu0 %v321
      %433 = vmatpush.msra.mxu0 %v382
      %434 = vmatpush.msra.mxu0 %v306
      %435 = vmatmul.f32.gmra.mxu0 %v417
      %v436 = vpop.f32.mrf.mxu0
      %v437 = vadd.f32 %v413, %v436
      %438 = vdwg.mxu0
      %439 = vmatpush.msra.mxu0 0.0
      %440 = vmatpush.msra.mxu0 0.0
      %441 = vmatpush.msra.mxu0 0.0
      %442 = vmatpush.msra.mxu0 0.0
      %443 = vmatpush.msra.mxu0 0.0
      %444 = vmatpush.msra.mxu0 0.0
      %445 = vmatpush.msra.mxu0 0.0
      %446 = vmatpush.msra.mxu0 %v374
      %447 = vmatpush.msra.mxu0 %v405
      %448 = vmatpush.msra.mxu0 %v361
      %449 = vmatpush.msra.mxu0 %v348
      %450 = vmatpush.msra.mxu0 %v394
      %451 = vmatpush.msra.mxu0 %v335
      %452 = vmatpush.msra.mxu0 %v322
      %453 = vmatpush.msra.mxu0 %v383
      %454 = vmatpush.msra.mxu0 %v307
      %455 = vmatmul.f32.gmra.mxu0 %v417
      %v456 = vpop.f32.mrf.mxu0
      %v457 = vadd.f32 %v413, %v456
      %458 = vdwg.mxu0
      %v459 = vmax.f32 %v437, 0.0
      %v460 = vmax.f32 %v457, 0.0
      %463 = vrot.lane.b32.xlu0 %v459, 17
      %v464 = vpop.permute.xlu0 %463
      %465 = vrot.lane.b32.xlu0 %v460, 17
      %v466 = vpop.permute.xlu0 %465
      %v467 = vsel %vm299, %v464, %v466
      %v471 = vsel %vm299, 0.0, %v464
      %v472 = vsel %vm299, %v466, 0.0
      %v473 = vsel %vm289, %v471, 0.0
      %v474 = vsel %vm290, %v467, 0.0
      %477 = vrot.lane.b32.xlu0 %v471, 126
      %v478 = vpop.permute.xlu0 %477
      %479 = vrot.lane.b32.xlu0 %v467, 126
      %v480 = vpop.permute.xlu0 %479
      %481 = vrot.lane.b32.xlu0 %v472, 126
      %v482 = vpop.permute.xlu0 %481
      %v483 = vsel %vm316, %v478, %v480
      %v484 = vsel %vm316, %v480, %v482
      %v487 = vsel %vm291, %v483, 0.0
      %v488 = vsel %vm292, %v484, 0.0
      %489 = vrot.lane.b32.xlu0 %v471, 112
      %v490 = vpop.permute.xlu0 %489
      %491 = vrot.lane.b32.xlu0 %v467, 112
      %v492 = vpop.permute.xlu0 %491
      %493 = vrot.lane.b32.xlu0 %v472, 112
      %v494 = vpop.permute.xlu0 %493
      %v495 = vsel %vm329, %v490, %v492
      %v496 = vsel %vm329, %v492, %v494
      %v499 = vsel %vm289, %v495, 0.0
      %v500 = vsel %vm290, %v496, 0.0
      %501 = vrot.lane.b32.xlu0 %v471, 110
      %v502 = vpop.permute.xlu0 %501
      %503 = vrot.lane.b32.xlu0 %v467, 110
      %v504 = vpop.permute.xlu0 %503
      %505 = vrot.lane.b32.xlu0 %v472, 110
      %v506 = vpop.permute.xlu0 %505
      %v507 = vsel %vm342, %v502, %v504
      %v508 = vsel %vm342, %v504, %v506
      %v511 = vsel %vm291, %v507, 0.0
      %v512 = vsel %vm292, %v508, 0.0
      %513 = vrot.lane.b32.xlu0 %v471, 96
      %v514 = vpop.permute.xlu0 %513
      %515 = vrot.lane.b32.xlu0 %v467, 96
      %v516 = vpop.permute.xlu0 %515
      %517 = vrot.lane.b32.xlu0 %v472, 96
      %v518 = vpop.permute.xlu0 %517
      %v519 = vsel %vm355, %v514, %v516
      %v520 = vsel %vm355, %v516, %v518
      %v523 = vsel %vm289, %v519, 0.0
      %v524 = vsel %vm290, %v520, 0.0
      %525 = vrot.lane.b32.xlu0 %v471, 94
      %v526 = vpop.permute.xlu0 %525
      %527 = vrot.lane.b32.xlu0 %v467, 94
      %v528 = vpop.permute.xlu0 %527
      %529 = vrot.lane.b32.xlu0 %v472, 94
      %v530 = vpop.permute.xlu0 %529
      %v531 = vsel %vm368, %v526, %v528
      %v532 = vsel %vm368, %v528, %v530
      %v535 = vsel %vm291, %v531, 0.0
      %v536 = vsel %vm292, %v532, 0.0
      %537 = vrot.lane.b32.xlu0 %v471, 127
      %v538 = vpop.permute.xlu0 %537
      %539 = vrot.lane.b32.xlu0 %v467, 127
      %v540 = vpop.permute.xlu0 %539
      %541 = vrot.lane.b32.xlu0 %v472, 127
      %v542 = vpop.permute.xlu0 %541
      %v543 = vsel %vm381, %v538, %v540
      %v544 = vsel %vm381, %v540, %v542
      %547 = vrot.lane.b32.xlu0 %v471, 111
      %v548 = vpop.permute.xlu0 %547
      %549 = vrot.lane.b32.xlu0 %v467, 111
      %v550 = vpop.permute.xlu0 %549
      %551 = vrot.lane.b32.xlu0 %v472, 111
      %v552 = vpop.permute.xlu0 %551
      %v553 = vsel %vm392, %v548, %v550
      %v554 = vsel %vm392, %v550, %v552
      %557 = vrot.lane.b32.xlu0 %v471, 95
      %v558 = vpop.permute.xlu0 %557
      %559 = vrot.lane.b32.xlu0 %v467, 95
      %v560 = vpop.permute.xlu0 %559
      %561 = vrot.lane.b32.xlu0 %v472, 95
      %v562 = vpop.permute.xlu0 %561
      %v563 = vsel %vm403, %v558, %v560
      %v564 = vsel %vm403, %v560, %v562
      %v567 = vld [vmem:[%s3] sm:$0xff]
      %v568 = vld [vmem:[%s4] sm:$0xff]
      %570 = vset.pattern.permute.xlu0 0
      %571 = vperm.xlu0 %570, %v568
      %v572 = vpop.permute.xlu0 %571
      %v575 = vsel %vm415, %v567, 0
      %577 = vmatpush.msra.mxu0 0.0
      %578 = vmatpush.msra.mxu0 0.0
      %579 = vmatpush.msra.mxu0 0.0
      %580 = vmatpush.msra.mxu0 0.0
      %581 = vmatpush.msra.mxu0 0.0
      %582 = vmatpush.msra.mxu0 0.0
      %583 = vmatpush.msra.mxu0 0.0
      %584 = vmatpush.msra.mxu0 %v535
      %585 = vmatpush.msra.mxu0 %v563
      %586 = vmatpush.msra.mxu0 %v523
      %587 = vmatpush.msra.mxu0 %v511
      %588 = vmatpush.msra.mxu0 %v553
      %589 = vmatpush.msra.mxu0 %v499
      %590 = vmatpush.msra.mxu0 %v487
      %591 = vmatpush.msra.mxu0 %v543
      %592 = vmatpush.msra.mxu0 %v473
      %593 = vmatmul.f32.gmra.mxu0 %v575
      %v594 = vpop.f32.mrf.mxu0
      %v595 = vadd.f32 %v572, %v594
      %596 = vdwg.mxu0
      %597 = vmatpush.msra.mxu0 0.0
      %598 = vmatpush.msra.mxu0 0.0
      %599 = vmatpush.msra.mxu0 0.0
      %600 = vmatpush.msra.mxu0 0.0
      %601 = vmatpush.msra.mxu0 0.0
      %602 = vmatpush.msra.mxu0 0.0
      %603 = vmatpush.msra.mxu0 0.0
      %604 = vmatpush.msra.mxu0 %v536
      %605 = vmatpush.msra.mxu0 %v564
      %606 = vmatpush.msra.mxu0 %v524
      %607 = vmatpush.msra.mxu0 %v512
      %608 = vmatpush.msra.mxu0 %v554
      %609 = vmatpush.msra.mxu0 %v500
      %610 = vmatpush.msra.mxu0 %v488
      %611 = vmatpush.msra.mxu0 %v544
      %612 = vmatpush.msra.mxu0 %v474
      %613 = vmatmul.f32.gmra.mxu0 %v575
      %v614 = vpop.f32.mrf.mxu0
      %v615 = vadd.f32 %v572, %v614
      %616 = vdwg.mxu0
      %v617 = vld [vmem:[%s5] sm:$0xff]
      %vm618 = vcmask 64512
      %v620 = vsel %vm618, %v617, 0
      %622 = vmatpush.msra.mxu0 0.0
      %623 = vmatpush.msra.mxu0 0.0
      %624 = vmatpush.msra.mxu0 0.0
      %625 = vmatpush.msra.mxu0 0.0
      %626 = vmatpush.msra.mxu0 0.0
      %627 = vmatpush.msra.mxu0 0.0
      %628 = vmatpush.msra.mxu0 0.0
      %629 = vmatpush.msra.mxu0 0.0
      %630 = vmatpush.msra.mxu0 0.0
      %631 = vmatpush.msra.mxu0 0.0
      %632 = vmatpush.msra.mxu0 0.0
      %633 = vmatpush.msra.mxu0 0.0
      %634 = vmatpush.msra.mxu0 0.0
      %635 = vmatpush.msra.mxu0 0.0
      %636 = vmatpush.msra.mxu0 0.0
      %637 = vmatpush.msra.mxu0 %v260
      %638 = vmatmul.f32.gmra.mxu0 %v620
      %v639 = vpop.f32.mrf.mxu0
      %v640 = vadd.f32 0.0, %v639
      %641 = vdwg.mxu0
      %642 = vmatpush.msra.mxu0 0.0
      %643 = vmatpush.msra.mxu0 0.0
      %644 = vmatpush.msra.mxu0 0.0
      %645 = vmatpush.msra.mxu0 0.0
      %646 = vmatpush.msra.mxu0 0.0
      %647 = vmatpush.msra.mxu0 0.0
      %648 = vmatpush.msra.mxu0 0.0
      %649 = vmatpush.msra.mxu0 0.0
      %650 = vmatpush.msra.mxu0 0.0
      %651 = vmatpush.msra.mxu0 0.0
      %652 = vmatpush.msra.mxu0 0.0
      %653 = vmatpush.msra.mxu0 0.0
      %654 = vmatpush.msra.mxu0 0.0
      %655 = vmatpush.msra.mxu0 0.0
      %656 = vmatpush.msra.mxu0 0.0
      %657 = vmatpush.msra.mxu0 %v261
      %658 = vmatmul.f32.gmra.mxu0 %v620
      %v659 = vpop.f32.mrf.mxu0
      %v660 = vadd.f32 0.0, %v659
      %661 = vdwg.mxu0
      %v662 = vadd.f32 %v595, %v640
      %v663 = vadd.f32 %v615, %v660
      %664 = vst [vmem:[%s251] sm:$0xff] %v662
      %665 = vst [vmem:[%s251 + $0x8] sm:$0xff] %v663
      %p666 = scmp.lt.s32.totalorder %s17, 1
      %s667 = scalar_select %p666, %s17, 1
      %s668 = smul.addr %s667, 2
      %s669 = smul.addr %s668, 8
      %s670 = scalar_lea.vmem %s6, %s669
      // Predicated region
      $region45: #{residual_block.1} parent=43 // pred_check
        %p671 = pneg %p166
      $region46: #{residual_block.1} parent=43 // pred_check_branch
        %673 = sbr.rel (%p671) target = $region48
      $region47: #{residual_block.1} parent=43 // pred_region
        _
      $region48: #{residual_block.1} parent=43 // pred_fallthru
        _
    $region44: #{residual_block.1} parent=5 // pred_fallthru
      _
    %p674 = scmp.le.s32.totalorder 2, %s12
    // Predicated region
    $region49: #{residual_block.1} parent=5 // pred_check
      %p675 = pneg %p674
    $region50: #{residual_block.1} parent=5 // pred_check_branch
      %677 = sbr.rel (%p675) target = $region52
    $region51: #{residual_block.1} parent=5 // pred_region
      %s678 = ssub.s32 %s12, 2
      // Predicated region
      $region53: #{residual_block.1} parent=51 // pred_check
        %p679 = pneg %p172
      $region54: #{residual_block.1} parent=51 // pred_check_branch
        %681 = sbr.rel (%p679) target = $region56
      $region55: #{residual_block.1} parent=51 // pred_region
        %p682 = scmp.lt.s32.totalorder %s18, 1
        %s683 = scalar_select %p682, %s18, 1
        %s684 = smul.addr %s683, 2
        %s685 = smul.addr %s684, 8
        %s686 = scalar_lea.vmem %s6, %s685
      $region56: #{residual_block.1} parent=51 // pred_fallthru
        _
    $region52: #{residual_block.1} parent=5 // pred_fallthru
      _
  $region6: #{residual_block.1} parent=0 // loop_footer
    %s16 = sadd.s32 1, %s12
  $region7: #{residual_block.1} parent=0 // loop_footer_branch
    %11 = sbr.rel target = $region3
  $region8: #{residual_block.1} parent=0 // loop_exit
    _

</llo_original>
